<compile_context>
chip_gen: v5e
topology: v5e:2x2
jax: 0.10.0
libtpu: 0.0.40
codegen_flags: <defaults>
</compile_context>

<pallas_src>
import functools
import math

import jax
import jax.numpy as jnp
from jax.experimental import pallas as pl
from jax.experimental.pallas import tpu as pltpu


def _attn_kernel(k_ref, qx_ref, wkT_ref, bk_ref, wpT_ref, bp_ref,
                 out_ref, score_ref, *, b_tile, k_len, hidden):
    # k_ref:     (b_tile * k_len, embed)   flattened keys for this batch tile (bf16)
    # qx_ref:    (1, hidden)               precomputed  q @ w_q^T + b_q  (batch-invariant)
    # wkT_ref:   (embed, hidden)           pre-transposed w_k weight
    # bk_ref:    (1, hidden)               f32
    # wpT_ref:   (hidden, out_dim)         pre-transposed projection weight
    # bp_ref:    (1, out_dim)              f32
    # out_ref:   (b_tile, out_dim)         lane-dense output block
    # score_ref: (b_tile, 1, k_len)        lane-dense attention-score block
    cdt = k_ref.dtype

    # (1) kx = w_k(k): one large MXU matmul over the whole batch tile (f32 accumulation).
    kx = jnp.dot(k_ref[...], wkT_ref[...],
                 preferred_element_type=jnp.float32) + bk_ref[...]          # (R, H) f32
    kx3 = kx.reshape(b_tile, k_len, hidden)                                 # free split (k_len % 8 == 0)
    kx3_c = kx3.astype(cdt)                                                 # bf16 copy for the MXU einsums

    # (2) logits on the MXU (flash-style batched einsum), computed ONCE, lane layout.
    qx3 = jnp.broadcast_to(qx_ref[...].reshape(1, 1, hidden), (b_tile, 1, hidden))
    s = jnp.einsum("bqh,bkh->bqk", qx3, kx3_c,
                   preferred_element_type=jnp.float32)                      # (B, 1, K) f32

    # (3) single softmax; exact divide because the scores are returned to the caller.
    m = jnp.max(s, axis=-1, keepdims=True)                                  # (B, 1, 1)
    e = jnp.exp(s - m)                                                      # (B, 1, K)
    d = jnp.sum(e, axis=-1, keepdims=True)                                  # (B, 1, 1)
    att = e * (1.0 / d)                                                     # (B, 1, K) f32

    # lane-dense score store, no relayout and no duplicate reduction.
    score_ref[...] = att.astype(score_ref.dtype)

    # (4) context on the MXU (flash-style), then drop the q_len==1 axis via a size-1
    #     sublane-axis reduction (same op class as a regular axis=1 reduce).
    ctx3 = jnp.einsum("bqk,bkh->bqh", att.astype(cdt), kx3_c,
                      preferred_element_type=jnp.float32)                   # (B, 1, H) f32
    ctx = jnp.sum(ctx3, axis=1)                                             # (B, H) f32

    # (5) output projection: second large MXU matmul over the whole tile.
    proj = jnp.dot(ctx.astype(cdt), wpT_ref[...],
                   preferred_element_type=jnp.float32) + bp_ref[...]        # (B, out_dim)
    out_ref[...] = proj.astype(out_ref.dtype)


def _round_up(x, m):
    return ((x + m - 1) // m) * m


def _vmem_capacity_bytes():
    """Physical per-core VMEM (128 MiB on v5e/v6e, 64 MiB on v7x); conservative fallback."""
    try:
        info = pltpu.get_tpu_info()
        cap = int(getattr(info, "vmem_capacity_bytes", 0))
        if cap > 0:
            return cap
    except Exception:
        pass
    return 64 << 20


def _choose_tiling(mb, per_batch_bytes, fixed_bytes, budget_bytes):
    """Pick a batch tile (multiple of 8) whose per-step footprint fits the VMEM budget and
    that yields a grid of >= 2 blocks (so the 'parallel' axis shards across v7x's 2 TCs)."""
    avail = max(budget_bytes - fixed_bytes, 8 * per_batch_bytes)
    max_bt = max(8, (int(avail // max(per_batch_bytes, 1)) // 8) * 8)
    half = max(8, ((_round_up(mb, 8) // 2) // 8) * 8)
    b_tile = min(max_bt, half)
    mb_pad = _round_up(mb, b_tile)
    if mb_pad // b_tile < 2:
        # tiny batches: pad one extra tile so both TensorCores get a block on v7x
        # (the per-block work is tiny here, so the padding cost is negligible).
        mb_pad = 2 * b_tile
    return b_tile, mb_pad


def noquery_attention(k, q_param, wk, bk, wq, bq, wp, bp, *, compute_dtype=jnp.bfloat16):
    """Attention forward (dot_product, n_head=1, q_len=1, dropout=0) with a learned query.

    k:       (mb, k_len, embed)
    q_param: (1, embed)
    Returns (output (mb, 1, out_dim), score (mb, 1, k_len)) like the PyTorch module.
    """
    mb, k_len, embed = k.shape
    q_len = q_param.shape[0]
    hidden = wk.shape[0]
    out_dim = wp.shape[0]

    assert q_len == 1, "kernel is specialized to the module default q_len == 1"
    assert k_len % 8 == 0, "k_len must be a multiple of 8 (sublane tile)"

    cdt = jnp.dtype(compute_dtype)
    cb = cdt.itemsize

    # Batch-invariant hoist: qx = w_q(q) + b_q computed once (f32), cast for the MXU.
    qx = (jnp.dot(q_param.astype(jnp.float32), wq.T.astype(jnp.float32))
          + bq.astype(jnp.float32)).reshape(1, hidden).astype(cdt)

    # Pre-transpose weights so the kernel feeds the MXU without in-kernel .T.
    wkT = wk.T.astype(cdt)                        # (embed, hidden)
    wpT = wp.T.astype(cdt)                        # (hidden, out_dim)
    bk2 = bk.reshape(1, hidden).astype(jnp.float32)
    bp2 = bp.reshape(1, out_dim).astype(jnp.float32)

    # --- VMEM-budgeted batch tiling (per generation via get_tpu_info) ---------------------
    per_batch = (k_len * (2 * embed * cb          # double-buffered k tile rows
                          + hidden * (4 + cb))    # kx f32 + bf16 copy
                 + 8 * (hidden * (cb + 4)         # qx broadcast + ctx3 (sublane-padded)
                        + max(k_len, 128) * 16)   # logits/exp/att temps + score block
                 + 8 * (out_dim + hidden))        # out block + ctx
    fixed = (2 * (embed * hidden + hidden * out_dim) * cb   # double-buffered weights
             + 8 * (hidden + out_dim) + 4 * hidden          # biases + qx
             + (2 << 20))                                   # compiler-internal headroom
    budget = int(_vmem_capacity_bytes() * 0.6)
    budget = max(min(budget, 96 << 20), 24 << 20)

    b_tile, mb_pad = _choose_tiling(mb, per_batch, fixed, budget)

    if mb_pad != mb:
        k = jnp.pad(k, ((0, mb_pad - mb), (0, 0), (0, 0)))
    k_flat = k.reshape(mb_pad * k_len, embed).astype(cdt)

    grid = (mb_pad // b_tile,)
    rows = b_tile * k_len

    kernel = functools.partial(_attn_kernel, b_tile=b_tile, k_len=k_len, hidden=hidden)

    grid_spec = pltpu.PrefetchScalarGridSpec(
        num_scalar_prefetch=0,
        grid=grid,
        in_specs=[
            pl.BlockSpec((rows, embed), lambda b: (b, 0)),        # k tile (streamed)
            pl.BlockSpec((1, hidden), lambda b: (0, 0)),          # qx        (resident)
            pl.BlockSpec((embed, hidden), lambda b: (0, 0)),      # w_k^T     (resident)
            pl.BlockSpec((1, hidden), lambda b: (0, 0)),          # b_k       (resident)
            pl.BlockSpec((hidden, out_dim), lambda b: (0, 0)),    # proj^T    (resident)
            pl.BlockSpec((1, out_dim), lambda b: (0, 0)),         # b_p       (resident)
        ],
        out_specs=[
            pl.BlockSpec((b_tile, out_dim), lambda b: (b, 0)),    # output (lane-dense)
            pl.BlockSpec((b_tile, 1, k_len), lambda b: (b, 0, 0)),  # score (lane-dense)
        ],
    )

    out2d, score3 = pl.pallas_call(
        kernel,
        out_shape=(jax.ShapeDtypeStruct((mb_pad, out_dim), jnp.float32),
                   jax.ShapeDtypeStruct((mb_pad, 1, k_len), jnp.float32)),
        grid_spec=grid_spec,
        compiler_params=pltpu.CompilerParams(
            dimension_semantics=("parallel",),
            vmem_limit_bytes=budget),
    )(k_flat, qx, wkT, bk2, wpT, bp2)

    # Wrapper-side layout plumbing back to the module's (mb, q_len, ...) shapes.
    return out2d[:mb].reshape(mb, 1, out_dim), score3[:mb]


def init_params(key, embed_dim, hidden_dim, out_dim, q_len):
    """Deterministic parameter init mirroring the PyTorch module's shapes/init ranges."""
    ks = jax.random.split(key, 7)
    lin_std = 1.0 / math.sqrt(embed_dim)
    proj_std = 1.0 / math.sqrt(hidden_dim)
    q_std = 1.0 / math.sqrt(embed_dim)
    wk = jax.random.uniform(ks[0], (hidden_dim, embed_dim), jnp.float32, -lin_std, lin_std)
    bk = jax.random.uniform(ks[1], (hidden_dim,), jnp.float32, -lin_std, lin_std)
    wq = jax.random.uniform(ks[2], (hidden_dim, embed_dim), jnp.float32, -lin_std, lin_std)
    bq = jax.random.uniform(ks[3], (hidden_dim,), jnp.float32, -lin_std, lin_std)
    wp = jax.random.uniform(ks[4], (out_dim, hidden_dim), jnp.float32, -proj_std, proj_std)
    bp = jax.random.uniform(ks[5], (out_dim,), jnp.float32, -proj_std, proj_std)
    q_param = jax.random.uniform(ks[6], (q_len, embed_dim), jnp.float32, -q_std, q_std)
    return wk, bk, wq, bq, wp, bp, q_param


def reference(k, q_param, wk, bk, wq, bq, wp, bp):
    """Plain-JAX reference of the PyTorch forward (n_head=1, dot_product, dropout=0)."""
    mb = k.shape[0]
    q = jnp.broadcast_to(q_param[None], (mb,) + q_param.shape)
    kx = jnp.einsum("bke,he->bkh", k, wk) + bk
    qx = jnp.einsum("bqe,he->bqh", q, wq) + bq
    score = jnp.einsum("bqh,bkh->bqk", qx, kx)
    score = jax.nn.softmax(score, axis=-1)
    out = jnp.einsum("bqk,bkh->bqh", score, kx)
    out = jnp.einsum("bqh,oh->bqo", out, wp) + bp
    return out, score


if __name__ == "__main__":
    # small shapes: batch=2, k_len=8, embed_dim=32, n_head=1 -> hidden=32, out_dim=32, q_len=1
    mb, k_len, embed_dim = 2, 8, 32
    hidden_dim, out_dim, q_len = embed_dim, embed_dim, 1

    key = jax.random.PRNGKey(0)
    kkey, pkey = jax.random.split(key)
    k = jax.random.normal(kkey, (mb, k_len, embed_dim), jnp.float32)
    wk, bk, wq, bq, wp, bp, q_param = init_params(pkey, embed_dim, hidden_dim, out_dim, q_len)

    out, score = noquery_attention(k, q_param, wk, bk, wq, bq, wp, bp)
    out = jax.block_until_ready(out)
    score = jax.block_until_ready(score)

    ref_out, ref_score = reference(k, q_param, wk, bk, wq, bq, wp, bp)
    assert out.shape == (mb, q_len, out_dim)
    assert score.shape == (mb, q_len, k_len)
    # Tolerance covers the bf16 MXU inputs (per the perf review); the softmax divide
    # itself is exact (no approx reciprocal on the returned scores).
    assert jnp.allclose(out, ref_out, atol=2e-2, rtol=2e-2)
    assert jnp.allclose(score, ref_score, atol=2e-2, rtol=2e-2)

    print("KERNEL_OK")
</pallas_src>

<mosaic_0001>
module attributes {stable_mosaic.version = 11 : i64} {
  func.func @_attn_kernel(%arg0: i32, %arg1: memref<64x32xbf16, #tpu.memory_space<vmem>>, %arg2: memref<1x32xbf16, #tpu.memory_space<vmem>>, %arg3: memref<32x32xbf16, #tpu.memory_space<vmem>>, %arg4: memref<1x32xf32, #tpu.memory_space<vmem>>, %arg5: memref<32x32xbf16, #tpu.memory_space<vmem>>, %arg6: memref<1x32xf32, #tpu.memory_space<vmem>>, %arg7: memref<8x32xf32, #tpu.memory_space<vmem>>, %arg8: memref<8x1x8xf32, #tpu.memory_space<vmem>>) attributes {dimension_semantics = [#tpu.dimension_semantics<parallel>], iteration_bounds = array<i64: 2>, scalar_prefetch = 0 : i64, scratch_operands = 0 : i64, tpu.core_type = #tpu.core_type<tc>, window_params = [{transform_indices = @transform_0, window_bounds = array<i64: 64, 32>}, {pipeline_mode = #tpu.pipeline_mode<synchronous>, transform_indices = @transform_1, window_bounds = array<i64: 1, 32>}, {pipeline_mode = #tpu.pipeline_mode<synchronous>, transform_indices = @transform_2, window_bounds = array<i64: 32, 32>}, {pipeline_mode = #tpu.pipeline_mode<synchronous>, transform_indices = @transform_3, window_bounds = array<i64: 1, 32>}, {pipeline_mode = #tpu.pipeline_mode<synchronous>, transform_indices = @transform_4, window_bounds = array<i64: 32, 32>}, {pipeline_mode = #tpu.pipeline_mode<synchronous>, transform_indices = @transform_5, window_bounds = array<i64: 1, 32>}, {transform_indices = @transform_6, window_bounds = array<i64: 8, 32>}, {transform_indices = @transform_7, window_bounds = array<i64: 8, 1, 8>}]} {
    %c0 = arith.constant 0 : index
    %c0_0 = arith.constant 0 : index
    %0 = vector.load %arg1[%c0, %c0_0] : memref<64x32xbf16, #tpu.memory_space<vmem>>, vector<64x32xbf16>
    %c0_1 = arith.constant 0 : index
    %c0_2 = arith.constant 0 : index
    %1 = vector.load %arg3[%c0_1, %c0_2] : memref<32x32xbf16, #tpu.memory_space<vmem>>, vector<32x32xbf16>
    %cst = arith.constant dense<0.000000e+00> : vector<64x32xf32>
    %2 = tpu.matmul %0, %1, %cst {dimension_numbers = #tpu.dot_dimension_numbers<[1], [0], [0], [1], [0, 0, 1, 1], [], []>} : vector<64x32xbf16>, vector<32x32xbf16>, vector<64x32xf32> -> vector<64x32xf32>
    %c0_3 = arith.constant 0 : index
    %c0_4 = arith.constant 0 : index
    %3 = vector.load %arg4[%c0_3, %c0_4] : memref<1x32xf32, #tpu.memory_space<vmem>>, vector<1x32xf32>
    %4 = vector.broadcast %3 : vector<1x32xf32> to vector<64x32xf32>
    %5 = arith.addf %2, %4 : vector<64x32xf32>
    %6 = vector.shape_cast %5 : vector<64x32xf32> to vector<8x8x32xf32>
    %7 = arith.truncf %6 : vector<8x8x32xf32> to vector<8x8x32xbf16>
    %c0_5 = arith.constant 0 : index
    %c0_6 = arith.constant 0 : index
    %8 = vector.load %arg2[%c0_5, %c0_6] : memref<1x32xbf16, #tpu.memory_space<vmem>>, vector<1x32xbf16>
    %9 = vector.shape_cast %8 : vector<1x32xbf16> to vector<1x1x32xbf16>
    %10 = vector.shape_cast %9 : vector<1x1x32xbf16> to vector<1x1x32xbf16>
    %11 = vector.broadcast %10 : vector<1x1x32xbf16> to vector<8x1x32xbf16>
    "tpu.trace_start"() <{level = 10 : i32, message = "bqh,bkh->bqk"}> : () -> ()
    %cst_7 = arith.constant dense<0.000000e+00> : vector<8x1x8xf32>
    %12 = tpu.matmul %11, %7, %cst_7 {dimension_numbers = #tpu.dot_dimension_numbers<[2], [2], [1], [1], [0, 0, 0, 1, 1, 1], [0], [0]>} : vector<8x1x32xbf16>, vector<8x8x32xbf16>, vector<8x1x8xf32> -> vector<8x1x8xf32>
    "tpu.trace_stop"() : () -> ()
    %cst_8 = arith.constant dense<0xFF800000> : vector<8x1xf32>
    %13 = vector.multi_reduction <maximumf>, %12, %cst_8 [2] : vector<8x1x8xf32> to vector<8x1xf32>
    %14 = vector.shape_cast %13 : vector<8x1xf32> to vector<8x1x1xf32>
    %15 = vector.broadcast %14 : vector<8x1x1xf32> to vector<8x1x8xf32>
    %16 = arith.subf %12, %15 : vector<8x1x8xf32>
    %17 = math.exp %16 : vector<8x1x8xf32>
    %cst_9 = arith.constant dense<0.000000e+00> : vector<8x1xf32>
    %18 = vector.multi_reduction <add>, %17, %cst_9 [2] : vector<8x1x8xf32> to vector<8x1xf32>
    %19 = vector.shape_cast %18 : vector<8x1xf32> to vector<8x1x1xf32>
    %cst_10 = arith.constant 1.000000e+00 : f32
    %20 = vector.broadcast %cst_10 : f32 to vector<8x1x1xf32>
    %21 = arith.divf %20, %19 : vector<8x1x1xf32>
    %22 = vector.broadcast %21 : vector<8x1x1xf32> to vector<8x1x8xf32>
    %23 = arith.mulf %17, %22 : vector<8x1x8xf32>
    %c0_11 = arith.constant 0 : index
    %c0_12 = arith.constant 0 : index
    %c0_13 = arith.constant 0 : index
    %24 = vector.load %arg8[%c0_11, %c0_12, %c0_13] : memref<8x1x8xf32, #tpu.memory_space<vmem>>, vector<8x1x8xf32>
    tpu.vector_store %arg8[%c0_11, %c0_12, %c0_13], %23 {strides = array<i32>} : memref<8x1x8xf32, #tpu.memory_space<vmem>>, vector<8x1x8xf32>,
    %25 = arith.truncf %23 : vector<8x1x8xf32> to vector<8x1x8xbf16>
    "tpu.trace_start"() <{level = 10 : i32, message = "bqk,bkh->bqh"}> : () -> ()
    %cst_14 = arith.constant dense<0.000000e+00> : vector<8x1x32xf32>
    %26 = tpu.matmul %25, %7, %cst_14 {dimension_numbers = #tpu.dot_dimension_numbers<[2], [1], [1], [2], [0, 0, 0, 1, 1, 2], [0], [0]>} : vector<8x1x8xbf16>, vector<8x8x32xbf16>, vector<8x1x32xf32> -> vector<8x1x32xf32>
    "tpu.trace_stop"() : () -> ()
    %cst_15 = arith.constant dense<0.000000e+00> : vector<8x32xf32>
    %27 = vector.multi_reduction <add>, %26, %cst_15 [1] : vector<8x1x32xf32> to vector<8x32xf32>
    %28 = arith.truncf %27 : vector<8x32xf32> to vector<8x32xbf16>
    %c0_16 = arith.constant 0 : index
    %c0_17 = arith.constant 0 : index
    %29 = vector.load %arg5[%c0_16, %c0_17] : memref<32x32xbf16, #tpu.memory_space<vmem>>, vector<32x32xbf16>
    %cst_18 = arith.constant dense<0.000000e+00> : vector<8x32xf32>
    %30 = tpu.matmul %28, %29, %cst_18 {dimension_numbers = #tpu.dot_dimension_numbers<[1], [0], [0], [1], [0, 0, 1, 1], [], []>} : vector<8x32xbf16>, vector<32x32xbf16>, vector<8x32xf32> -> vector<8x32xf32>
    %c0_19 = arith.constant 0 : index
    %c0_20 = arith.constant 0 : index
    %31 = vector.load %arg6[%c0_19, %c0_20] : memref<1x32xf32, #tpu.memory_space<vmem>>, vector<1x32xf32>
    %32 = vector.broadcast %31 : vector<1x32xf32> to vector<8x32xf32>
    %33 = arith.addf %30, %32 : vector<8x32xf32>
    %c0_21 = arith.constant 0 : index
    %c0_22 = arith.constant 0 : index
    %34 = vector.load %arg7[%c0_21, %c0_22] : memref<8x32xf32, #tpu.memory_space<vmem>>, vector<8x32xf32>
    tpu.vector_store %arg7[%c0_21, %c0_22], %33 {strides = array<i32>} : memref<8x32xf32, #tpu.memory_space<vmem>>, vector<8x32xf32>,
    return
  }
  func.func @transform_0(%arg0: i32) -> (i32, i32) {
    %c0_i32 = arith.constant 0 : i32
    %c0_i32_0 = arith.constant 0 : i32
    return %arg0, %c0_i32 : i32, i32
  }
  func.func @transform_1(%arg0: i32) -> (i32, i32) {
    %c0_i32 = arith.constant 0 : i32
    %c0_i32_0 = arith.constant 0 : i32
    %c0_i32_1 = arith.constant 0 : i32
    return %c0_i32, %c0_i32_0 : i32, i32
  }
  func.func @transform_2(%arg0: i32) -> (i32, i32) {
    %c0_i32 = arith.constant 0 : i32
    %c0_i32_0 = arith.constant 0 : i32
    %c0_i32_1 = arith.constant 0 : i32
    return %c0_i32, %c0_i32_0 : i32, i32
  }
  func.func @transform_3(%arg0: i32) -> (i32, i32) {
    %c0_i32 = arith.constant 0 : i32
    %c0_i32_0 = arith.constant 0 : i32
    %c0_i32_1 = arith.constant 0 : i32
    return %c0_i32, %c0_i32_0 : i32, i32
  }
  func.func @transform_4(%arg0: i32) -> (i32, i32) {
    %c0_i32 = arith.constant 0 : i32
    %c0_i32_0 = arith.constant 0 : i32
    %c0_i32_1 = arith.constant 0 : i32
    return %c0_i32, %c0_i32_0 : i32, i32
  }
  func.func @transform_5(%arg0: i32) -> (i32, i32) {
    %c0_i32 = arith.constant 0 : i32
    %c0_i32_0 = arith.constant 0 : i32
    %c0_i32_1 = arith.constant 0 : i32
    return %c0_i32, %c0_i32_0 : i32, i32
  }
  func.func @transform_6(%arg0: i32) -> (i32, i32) {
    %c0_i32 = arith.constant 0 : i32
    %c0_i32_0 = arith.constant 0 : i32
    return %arg0, %c0_i32 : i32, i32
  }
  func.func @transform_7(%arg0: i32) -> (i32, i32, i32) {
    %c0_i32 = arith.constant 0 : i32
    %c0_i32_0 = arith.constant 0 : i32
    %c0_i32_1 = arith.constant 0 : i32
    return %arg0, %c0_i32, %c0_i32_0 : i32, i32, i32
  }
}

</mosaic_0001>

<llo_original>
// kernel: tpu_custom_call.1
$region0: #{tpu_custom_call.1}
  #allocation0 [shape = 'u32[]', space=smem, size = 0x4, offset = 0x4, fixed_abs, tag = 'smem constant byte address 0x4 - core index']
  #allocation1 [shape = 'u32[72,128]{1,0:T(1,128)}', space=vmem, size = 0x9000, scoped, tag = 'internal scratch']
  %s0 = inlined_call_operand.vmem [shape: bf16[128,32], index: 0, kind: input, shape index: {}]
  %s1 = inlined_call_operand.vmem [shape: bf16[1,32], index: 1, kind: input, shape index: {}]
  %s2 = inlined_call_operand.vmem [shape: bf16[32,32], index: 2, kind: input, shape index: {}]
  %s3 = inlined_call_operand.vmem [shape: f32[1,32], index: 3, kind: input, shape index: {}]
  %s4 = inlined_call_operand.vmem [shape: bf16[32,32], index: 4, kind: input, shape index: {}]
  %s5 = inlined_call_operand.vmem [shape: f32[1,32], index: 5, kind: input, shape index: {}]
  %s6 = inlined_call_operand.hbm [shape: f32[16,32], index: 6, kind: output, shape index: {0}]
  %s7 = inlined_call_operand.vmem [shape: f32[16,1,8], index: 7, kind: output, shape index: {1}]
  %8 = xla_tuple %s6, %s7
  %s9 = sld [smem:[#allocation0]]
  $region65: #{tpu_custom_call.1} parent=0
    _
  %s11 = ssub.s32 1, %s9
  %s12 = scalar_select 0, %s11, %s9
  $region1: #{tpu_custom_call.1} parent=0
    #allocation2 [shape = 'u8[8192]{0}', space=vmem, size = 0x2000, scoped, tag = 'output window, operand 0']
    #allocation3 [shape = 's32[2]{0}', space=sflag, size = 0x8, scoped, tag = 'scoped memory for tpu_custom_call.1']
    %13 = vsyncpa [#allocation3], 0
    %s14 = scalar_lea.sflag [#allocation3], 1
    %15 = vsyncpa %s14, 0
    loop: start=0, step=1, limit=4
    $region2: #{tpu_custom_call.1} parent=1 // loop_pre_header
      _
    $region3: #{tpu_custom_call.1} parent=1 // loop_header
      %s17 = sphi 0, %s21
      %p18 = scmp.ge.s32.totalorder %s17, 4
      %s27 = sphi 0, %s29
      %s30 = sphi 0, %s27
      %s31 = sphi 0, %s30
      %s47 = sphi 0, %s31
      %s51 = sphi 0, %s51
      %s53 = sphi 0, %s51
      %s54 = sphi 0, %s53
      %s68 = sphi 0, %s54
      %s72 = sphi 0, %s72
      %s74 = sphi 0, %s72
      %s75 = sphi 0, %s74
      %s89 = sphi 0, %s75
      %s93 = sphi 0, %s93
      %s95 = sphi 0, %s93
      %s96 = sphi 0, %s95
      %s110 = sphi 0, %s96
      %s114 = sphi 0, %s114
      %s116 = sphi 0, %s114
      %s117 = sphi 0, %s116
      %s131 = sphi 0, %s117
      %s135 = sphi 0, %s135
      %s137 = sphi 0, %s135
      %s138 = sphi 0, %s137
      %s152 = sphi 0, %s138
      %s158 = sphi 0, %s160
      %s161 = sphi 0, %s158
      %s162 = sphi 0, %s161
      %s178 = sphi 0, %s162
      %s184 = sphi 0, %s186
      %s187 = sphi 0, %s184
      %s188 = sphi 0, %s187
      %s204 = sphi 0, %s188
    $region4: #{tpu_custom_call.1} parent=1 // loop_header_branch
      %20 = sbr.rel (%p18) target = $region8
    $region5: #{tpu_custom_call.1} parent=1 // loop_body
      %s22 = ssub.s32 %s17, 1
      %s23 = ssub.s32 %s17, 2
      %s24 = sadd.s32 %s17, 1
      %s25 = ssub.s32 %s17, %s24
      %p26 = scmp.eq.s32.totalorder %s25, 0
      %s28 = sadd.s32 %s27, 1
      %s29 = scalar_select %p26, %s27, %s28
      %p32 = pneg %p26
      %p33 = scmp.eq.s32.totalorder %s17, 1
      %p34 = por %p32, %p33
      %p35 = scmp.ne.s32.totalorder %s27, %s30
      %p36 = scmp.eq.s32.totalorder %s17, 0
      %p37 = por %p35, %p36
      %p38 = scmp.ne.s32.totalorder %s27, %s30
      %p39 = scmp.eq.s32.totalorder %s22, 1
      %p40 = por %p38, %p39
      %p41 = scmp.ne.s32.totalorder %s30, %s31
      %p42 = scmp.eq.s32.totalorder %s22, 0
      %p43 = por %p41, %p42
      %p44 = scmp.ne.s32.totalorder %s30, %s31
      %p45 = scmp.eq.s32.totalorder %s23, 1
      %p46 = por %p44, %p45
      %p48 = scmp.ne.s32.totalorder %s31, %s47
      %p49 = scmp.eq.s32.totalorder %s23, 0
      %p50 = por %p48, %p49
      %s52 = sadd.s32 %s51, 1
      %p55 = scmp.eq.s32.totalorder %s17, 1
      %p56 = scmp.ne.s32.totalorder %s51, %s53
      %p57 = scmp.eq.s32.totalorder %s17, 0
      %p58 = por %p56, %p57
      %p59 = scmp.ne.s32.totalorder %s51, %s53
      %p60 = scmp.eq.s32.totalorder %s22, 1
      %p61 = por %p59, %p60
      %p62 = scmp.ne.s32.totalorder %s53, %s54
      %p63 = scmp.eq.s32.totalorder %s22, 0
      %p64 = por %p62, %p63
      %p65 = scmp.ne.s32.totalorder %s53, %s54
      %p66 = scmp.eq.s32.totalorder %s23, 1
      %p67 = por %p65, %p66
      %p69 = scmp.ne.s32.totalorder %s54, %s68
      %p70 = scmp.eq.s32.totalorder %s23, 0
      %p71 = por %p69, %p70
      %s73 = sadd.s32 %s72, 1
      %p76 = scmp.eq.s32.totalorder %s17, 1
      %p77 = scmp.ne.s32.totalorder %s72, %s74
      %p78 = scmp.eq.s32.totalorder %s17, 0
      %p79 = por %p77, %p78
      %p80 = scmp.ne.s32.totalorder %s72, %s74
      %p81 = scmp.eq.s32.totalorder %s22, 1
      %p82 = por %p80, %p81
      %p83 = scmp.ne.s32.totalorder %s74, %s75
      %p84 = scmp.eq.s32.totalorder %s22, 0
      %p85 = por %p83, %p84
      %p86 = scmp.ne.s32.totalorder %s74, %s75
      %p87 = scmp.eq.s32.totalorder %s23, 1
      %p88 = por %p86, %p87
      %p90 = scmp.ne.s32.totalorder %s75, %s89
      %p91 = scmp.eq.s32.totalorder %s23, 0
      %p92 = por %p90, %p91
      %s94 = sadd.s32 %s93, 1
      %p97 = scmp.eq.s32.totalorder %s17, 1
      %p98 = scmp.ne.s32.totalorder %s93, %s95
      %p99 = scmp.eq.s32.totalorder %s17, 0
      %p100 = por %p98, %p99
      %p101 = scmp.ne.s32.totalorder %s93, %s95
      %p102 = scmp.eq.s32.totalorder %s22, 1
      %p103 = por %p101, %p102
      %p104 = scmp.ne.s32.totalorder %s95, %s96
      %p105 = scmp.eq.s32.totalorder %s22, 0
      %p106 = por %p104, %p105
      %p107 = scmp.ne.s32.totalorder %s95, %s96
      %p108 = scmp.eq.s32.totalorder %s23, 1
      %p109 = por %p107, %p108
      %p111 = scmp.ne.s32.totalorder %s96, %s110
      %p112 = scmp.eq.s32.totalorder %s23, 0
      %p113 = por %p111, %p112
      %s115 = sadd.s32 %s114, 1
      %p118 = scmp.eq.s32.totalorder %s17, 1
      %p119 = scmp.ne.s32.totalorder %s114, %s116
      %p120 = scmp.eq.s32.totalorder %s17, 0
      %p121 = por %p119, %p120
      %p122 = scmp.ne.s32.totalorder %s114, %s116
      %p123 = scmp.eq.s32.totalorder %s22, 1
      %p124 = por %p122, %p123
      %p125 = scmp.ne.s32.totalorder %s116, %s117
      %p126 = scmp.eq.s32.totalorder %s22, 0
      %p127 = por %p125, %p126
      %p128 = scmp.ne.s32.totalorder %s116, %s117
      %p129 = scmp.eq.s32.totalorder %s23, 1
      %p130 = por %p128, %p129
      %p132 = scmp.ne.s32.totalorder %s117, %s131
      %p133 = scmp.eq.s32.totalorder %s23, 0
      %p134 = por %p132, %p133
      %s136 = sadd.s32 %s135, 1
      %p139 = scmp.eq.s32.totalorder %s17, 1
      %p140 = scmp.ne.s32.totalorder %s135, %s137
      %p141 = scmp.eq.s32.totalorder %s17, 0
      %p142 = por %p140, %p141
      %p143 = scmp.ne.s32.totalorder %s135, %s137
      %p144 = scmp.eq.s32.totalorder %s22, 1
      %p145 = por %p143, %p144
      %p146 = scmp.ne.s32.totalorder %s137, %s138
      %p147 = scmp.eq.s32.totalorder %s22, 0
      %p148 = por %p146, %p147
      %p149 = scmp.ne.s32.totalorder %s137, %s138
      %p150 = scmp.eq.s32.totalorder %s23, 1
      %p151 = por %p149, %p150
      %p153 = scmp.ne.s32.totalorder %s138, %s152
      %p154 = scmp.eq.s32.totalorder %s23, 0
      %p155 = por %p153, %p154
      %s156 = ssub.s32 %s17, %s24
      %p157 = scmp.eq.s32.totalorder %s156, 0
      %s159 = sadd.s32 %s158, 1
      %s160 = scalar_select %p157, %s158, %s159
      %p163 = pneg %p157
      %p164 = scmp.eq.s32.totalorder %s17, 1
      %p165 = por %p163, %p164
      %p166 = scmp.ne.s32.totalorder %s158, %s161
      %p167 = scmp.eq.s32.totalorder %s17, 0
      %p168 = por %p166, %p167
      %p169 = scmp.ne.s32.totalorder %s158, %s161
      %p170 = scmp.eq.s32.totalorder %s22, 1
      %p171 = por %p169, %p170
      %p172 = scmp.ne.s32.totalorder %s161, %s162
      %p173 = scmp.eq.s32.totalorder %s22, 0
      %p174 = por %p172, %p173
      %p175 = scmp.ne.s32.totalorder %s161, %s162
      %p176 = scmp.eq.s32.totalorder %s23, 1
      %p177 = por %p175, %p176
      %p179 = scmp.ne.s32.totalorder %s162, %s178
      %p180 = scmp.eq.s32.totalorder %s23, 0
      %p181 = por %p179, %p180
      %s182 = ssub.s32 %s17, %s24
      %p183 = scmp.eq.s32.totalorder %s182, 0
      %s185 = sadd.s32 %s184, 1
      %s186 = scalar_select %p183, %s184, %s185
      %p189 = pneg %p183
      %p190 = scmp.eq.s32.totalorder %s17, 1
      %p191 = por %p189, %p190
      %p192 = scmp.ne.s32.totalorder %s184, %s187
      %p193 = scmp.eq.s32.totalorder %s17, 0
      %p194 = por %p192, %p193
      %p195 = scmp.ne.s32.totalorder %s184, %s187
      %p196 = scmp.eq.s32.totalorder %s22, 1
      %p197 = por %p195, %p196
      %p198 = scmp.ne.s32.totalorder %s187, %s188
      %p199 = scmp.eq.s32.totalorder %s22, 0
      %p200 = por %p198, %p199
      %p201 = scmp.ne.s32.totalorder %s187, %s188
      %p202 = scmp.eq.s32.totalorder %s23, 1
      %p203 = por %p201, %p202
      %p205 = scmp.ne.s32.totalorder %s188, %s204
      %p206 = scmp.eq.s32.totalorder %s23, 0
      %p207 = por %p205, %p206
      %p208 = scmp.le.s32.totalorder 1, %s17
      %p209 = scmp.lt.s32.totalorder %s17, 3
      %p210 = pnand %p208, %p209
      %p211 = pneg %p210
      // Predicated region
      $region9: #{tpu_custom_call.1} parent=5 // pred_check
        _
      $region10: #{tpu_custom_call.1} parent=5 // pred_check_branch
        %213 = sbr.rel (%p210) target = $region12
      $region11: #{tpu_custom_call.1} parent=5 // pred_region
        %s214 = ssub.s32 %s17, 1
        // Predicated region
        $region13: #{tpu_custom_call.1} parent=11 // pred_check
          %p215 = pneg %p64
        $region14: #{tpu_custom_call.1} parent=11 // pred_check_branch
          %217 = sbr.rel (%p215) target = $region16
        $region15: #{tpu_custom_call.1} parent=11 // pred_region
          _
        $region16: #{tpu_custom_call.1} parent=11 // pred_fallthru
          _
        // Predicated region
        $region17: #{tpu_custom_call.1} parent=11 // pred_check
          %p218 = pneg %p85
        $region18: #{tpu_custom_call.1} parent=11 // pred_check_branch
          %220 = sbr.rel (%p218) target = $region20
        $region19: #{tpu_custom_call.1} parent=11 // pred_region
          _
        $region20: #{tpu_custom_call.1} parent=11 // pred_fallthru
          _
        // Predicated region
        $region21: #{tpu_custom_call.1} parent=11 // pred_check
          %p221 = pneg %p106
        $region22: #{tpu_custom_call.1} parent=11 // pred_check_branch
          %223 = sbr.rel (%p221) target = $region24
        $region23: #{tpu_custom_call.1} parent=11 // pred_region
          _
        $region24: #{tpu_custom_call.1} parent=11 // pred_fallthru
          _
        // Predicated region
        $region25: #{tpu_custom_call.1} parent=11 // pred_check
          %p224 = pneg %p127
        $region26: #{tpu_custom_call.1} parent=11 // pred_check_branch
          %226 = sbr.rel (%p224) target = $region28
        $region27: #{tpu_custom_call.1} parent=11 // pred_region
          _
        $region28: #{tpu_custom_call.1} parent=11 // pred_fallthru
          _
        // Predicated region
        $region29: #{tpu_custom_call.1} parent=11 // pred_check
          %p227 = pneg %p148
        $region30: #{tpu_custom_call.1} parent=11 // pred_check_branch
          %229 = sbr.rel (%p227) target = $region32
        $region31: #{tpu_custom_call.1} parent=11 // pred_region
          _
        $region32: #{tpu_custom_call.1} parent=11 // pred_fallthru
          _
      $region12: #{tpu_custom_call.1} parent=5 // pred_fallthru
        _
      %p230 = scmp.lt.s32.totalorder %s17, 2
      // Predicated region
      $region33: #{tpu_custom_call.1} parent=5 // pred_check
        %p231 = pneg %p230
      $region34: #{tpu_custom_call.1} parent=5 // pred_check_branch
        %233 = sbr.rel (%p231) target = $region36
      $region35: #{tpu_custom_call.1} parent=5 // pred_region
        // Predicated region
        $region37: #{tpu_custom_call.1} parent=35 // pred_check
          %p234 = pneg %p37
        $region38: #{tpu_custom_call.1} parent=35 // pred_check_branch
          %236 = sbr.rel (%p234) target = $region40
        $region39: #{tpu_custom_call.1} parent=35 // pred_region
          %s237 = smul.u32 8, %s17
          %p238 = scmp.lt.s32.totalorder %s237, 15
          %s239 = scalar_select %p238, %s237, 15
          %s240 = smul.addr %s239, 4
          %s241 = scalar_lea.vmem %s0, %s240
          %s242 = smul.u32 8, %s17
        $region40: #{tpu_custom_call.1} parent=35 // pred_fallthru
          _
      $region36: #{tpu_custom_call.1} parent=5 // pred_fallthru
        _
      %p243 = scmp.le.s32.totalorder 1, %s17
      %p244 = scmp.lt.s32.totalorder %s17, 3
      %p245 = pnand %p243, %p244
      %p246 = pneg %p245
      // Predicated region
      $region41: #{tpu_custom_call.1} parent=5 // pred_check
        _
      $region42: #{tpu_custom_call.1} parent=5 // pred_check_branch
        %248 = sbr.rel (%p245) target = $region44
      $region43: #{tpu_custom_call.1} parent=5 // pred_region
        %s249 = ssub.s32 %s17, 1
        %s250 = smul.u32 8, %s22
        %p251 = scmp.lt.s32.totalorder %s250, 15
        %s252 = scalar_select %p251, %s250, 15
        %s253 = smul.addr %s252, 4
        %s254 = scalar_lea.vmem %s0, %s253
        %p255 = pneg %p43
        %p256 = pneg %p40
        %p257 = pneg %p64
        %p258 = pneg %p61
        %p259 = pneg %p85
        %p260 = pneg %p82
        %p261 = pneg %p106
        %p262 = pneg %p103
        %p263 = pneg %p127
        %p264 = pneg %p124
        %p265 = pneg %p148
        %p266 = pneg %p145
        %p267 = pneg %p174
        %p268 = pneg %p171
        %s269 = sand.u32 %s161, 1
        %s270 = scalar_lea.sflag [#allocation3], %s269
        %s271 = sand.u32 %s161, 1
        %s272 = smul.addr %s271, 8
        %s273 = scalar_lea.vmem [#allocation2], %s272
        %p274 = pneg %p200
        %p275 = pneg %p197
        %s276 = smul.u32 8, %s22
        %p277 = scmp.lt.s32.totalorder %s276, 15
        %s278 = scalar_select %p277, %s276, 15
        %s279 = scalar_lea.vmem %s7, %s278
        %s280 = smul.u32 8, %s22
        %p281 = scmp.lt.s32.totalorder %s280, 15
        %s282 = scalar_select %p281, %s280, 15
        %s283 = smul.addr %s282, 4
        %s284 = scalar_lea.vmem %s0, %s283
        %s285 = smul.u32 8, %s22
        %s286 = smul.u32 8, %s22
        %p287 = scmp.lt.s32.totalorder %s286, 15
        %s288 = scalar_select %p287, %s286, 15
        %s289 = scalar_lea.vmem %s7, %s288
        %s290 = smul.u32 8, %s22
        %v292 = vld [vmem:[%s284] sm:$0xf]
        %v293 = vld [vmem:[%s284 + $0x4] sm:$0xf]
        %v294 = vld [vmem:[%s284 + $0x8] sm:$0xf]
        %v295 = vld [vmem:[%s284 + $0xc] sm:$0xf]
        %v296 = vld [vmem:[%s284 + $0x10] sm:$0xf]
        %v297 = vld [vmem:[%s284 + $0x14] sm:$0xf]
        %v298 = vld [vmem:[%s284 + $0x18] sm:$0xf]
        %v299 = vld [vmem:[%s284 + $0x1c] sm:$0xf]
        %v300 = vld [vmem:[%s2] sm:$0xf]
        %v301 = vld [vmem:[%s2 + $0x4] sm:$0xf]
        %v302 = vld [vmem:[%s2 + $0x8] sm:$0xf]
        %v303 = vld [vmem:[%s2 + $0xc] sm:$0xf]
        %v304 = vld [vmem:[%s3] sm:$0x1]
        %v306 = vperm.slane %v304, 0
        %v316 = vunpack.c.l.b16 %v292
        %v317 = vunpack.c.l.b16 %v293
        %v318 = vunpack.c.l.b16 %v294
        %v319 = vunpack.c.l.b16 %v295
        %v320 = vunpack.c.l.b16 %v296
        %v321 = vunpack.c.l.b16 %v297
        %v322 = vunpack.c.l.b16 %v298
        %v323 = vunpack.c.l.b16 %v299
        %v324 = vpack.c.b16 %v317, %v316
        %v325 = vpack.c.b16 %v319, %v318
        %v326 = vpack.c.b16 %v321, %v320
        %v327 = vpack.c.b16 %v323, %v322
        %v332 = vunpack.c.l.b16 %v300
        %v333 = vunpack.c.l.b16 %v301
        %v334 = vunpack.c.l.b16 %v302
        %v335 = vunpack.c.l.b16 %v303
        %v336 = vpack.c.b16 %v333, %v332
        %v337 = vpack.c.b16 %v335, %v334
        %vm340 = vcmask 261120
        %v342 = vsel %vm340, %v324, 0
        %v345 = vsel %vm340, %v325, 0
        %v348 = vsel %vm340, %v326, 0
        %v351 = vsel %vm340, %v327, 0
        %353 = vmatpush.bf16.msra.mxu0 0
        %354 = vmatpush.bf16.msra.mxu0 0
        %355 = vmatpush.bf16.msra.mxu0 0
        %356 = vmatpush.bf16.msra.mxu0 0
        %357 = vmatpush.bf16.msra.mxu0 0
        %358 = vmatpush.bf16.msra.mxu0 0
        %359 = vmatpush.bf16.msra.mxu0 %v337
        %360 = vmatpush.bf16.msra.mxu0 %v336
        %361 = vmatmul.bf16.gmra.mxu0 %v342
        %v362 = vpop.f32.mrf.mxu0
        %v363 = vadd.f32 %v306, %v362
        %v364 = vpop.f32.mrf.mxu0
        %v365 = vadd.f32 %v306, %v364
        %366 = vmatmul.bf16.gmra.mxu0 %v345
        %v367 = vpop.f32.mrf.mxu0
        %v368 = vadd.f32 %v306, %v367
        %v369 = vpop.f32.mrf.mxu0
        %v370 = vadd.f32 %v306, %v369
        %371 = vmatmul.bf16.gmra.mxu0 %v348
        %v372 = vpop.f32.mrf.mxu0
        %v373 = vadd.f32 %v306, %v372
        %v374 = vpop.f32.mrf.mxu0
        %v375 = vadd.f32 %v306, %v374
        %376 = vmatmul.bf16.gmra.mxu0 %v351
        %v377 = vpop.f32.mrf.mxu0
        %v378 = vadd.f32 %v306, %v377
        %v379 = vpop.f32.mrf.mxu0
        %v380 = vadd.f32 %v306, %v379
        %381 = vdwg.mxu0
        %v382 = vpack.c.bf16 %v363, %v363
        %v383 = vpack.c.bf16 %v365, %v365
        %v384 = vpack.c.bf16 %v368, %v368
        %v385 = vpack.c.bf16 %v370, %v370
        %v386 = vpack.c.bf16 %v373, %v373
        %v387 = vpack.c.bf16 %v375, %v375
        %v388 = vpack.c.bf16 %v378, %v378
        %v389 = vpack.c.bf16 %v380, %v380
        %v390 = vld [vmem:[%s1] sm:$0x1]
        %v392 = vsel %vm340, %v390, 0
        %v395 = vsel %vm340, %v382, 0
        %397 = vmatpush.bf16.xpose.msra.mxu0 0
        %398 = vmatpush.bf16.xpose.msra.mxu0 0
        %399 = vmatpush.bf16.xpose.msra.mxu0 0
        %400 = vmatpush.bf16.xpose.msra.mxu0 0
        %401 = vmatpush.bf16.xpose.msra.mxu0 0
        %402 = vmatpush.bf16.xpose.msra.mxu0 0
        %403 = vmatpush.bf16.xpose.msra.mxu0 0
        %404 = vmatpush.bf16.xpose.msra.mxu0 %v395
        %405 = vmatmul.bf16.gmra.mxu0 %v392
        %v406 = vpop.f32.mrf.mxu0
        %v407 = vadd.f32 0.0, %v406
        %v408 = vpop.f32.mrf.mxu0
        %409 = vdwg.mxu0
        %v411 = vsel %vm340, %v383, 0
        %413 = vmatpush.bf16.xpose.msra.mxu0 0
        %414 = vmatpush.bf16.xpose.msra.mxu0 0
        %415 = vmatpush.bf16.xpose.msra.mxu0 0
        %416 = vmatpush.bf16.xpose.msra.mxu0 0
        %417 = vmatpush.bf16.xpose.msra.mxu0 0
        %418 = vmatpush.bf16.xpose.msra.mxu0 0
        %419 = vmatpush.bf16.xpose.msra.mxu0 0
        %420 = vmatpush.bf16.xpose.msra.mxu0 %v411
        %421 = vmatmul.bf16.gmra.mxu0 %v392
        %v422 = vpop.f32.mrf.mxu0
        %v423 = vadd.f32 0.0, %v422
        %v424 = vpop.f32.mrf.mxu0
        %425 = vdwg.mxu0
        %v427 = vsel %vm340, %v384, 0
        %429 = vmatpush.bf16.xpose.msra.mxu0 0
        %430 = vmatpush.bf16.xpose.msra.mxu0 0
        %431 = vmatpush.bf16.xpose.msra.mxu0 0
        %432 = vmatpush.bf16.xpose.msra.mxu0 0
        %433 = vmatpush.bf16.xpose.msra.mxu0 0
        %434 = vmatpush.bf16.xpose.msra.mxu0 0
        %435 = vmatpush.bf16.xpose.msra.mxu0 0
        %436 = vmatpush.bf16.xpose.msra.mxu0 %v427
        %437 = vmatmul.bf16.gmra.mxu0 %v392
        %v438 = vpop.f32.mrf.mxu0
        %v439 = vadd.f32 0.0, %v438
        %v440 = vpop.f32.mrf.mxu0
        %441 = vdwg.mxu0
        %v443 = vsel %vm340, %v385, 0
        %445 = vmatpush.bf16.xpose.msra.mxu0 0
        %446 = vmatpush.bf16.xpose.msra.mxu0 0
        %447 = vmatpush.bf16.xpose.msra.mxu0 0
        %448 = vmatpush.bf16.xpose.msra.mxu0 0
        %449 = vmatpush.bf16.xpose.msra.mxu0 0
        %450 = vmatpush.bf16.xpose.msra.mxu0 0
        %451 = vmatpush.bf16.xpose.msra.mxu0 0
        %452 = vmatpush.bf16.xpose.msra.mxu0 %v443
        %453 = vmatmul.bf16.gmra.mxu0 %v392
        %v454 = vpop.f32.mrf.mxu0
        %v455 = vadd.f32 0.0, %v454
        %v456 = vpop.f32.mrf.mxu0
        %457 = vdwg.mxu0
        %v459 = vsel %vm340, %v386, 0
        %461 = vmatpush.bf16.xpose.msra.mxu0 0
        %462 = vmatpush.bf16.xpose.msra.mxu0 0
        %463 = vmatpush.bf16.xpose.msra.mxu0 0
        %464 = vmatpush.bf16.xpose.msra.mxu0 0
        %465 = vmatpush.bf16.xpose.msra.mxu0 0
        %466 = vmatpush.bf16.xpose.msra.mxu0 0
        %467 = vmatpush.bf16.xpose.msra.mxu0 0
        %468 = vmatpush.bf16.xpose.msra.mxu0 %v459
        %469 = vmatmul.bf16.gmra.mxu0 %v392
        %v470 = vpop.f32.mrf.mxu0
        %v471 = vadd.f32 0.0, %v470
        %v472 = vpop.f32.mrf.mxu0
        %473 = vdwg.mxu0
        %v475 = vsel %vm340, %v387, 0
        %477 = vmatpush.bf16.xpose.msra.mxu0 0
        %478 = vmatpush.bf16.xpose.msra.mxu0 0
        %479 = vmatpush.bf16.xpose.msra.mxu0 0
        %480 = vmatpush.bf16.xpose.msra.mxu0 0
        %481 = vmatpush.bf16.xpose.msra.mxu0 0
        %482 = vmatpush.bf16.xpose.msra.mxu0 0
        %483 = vmatpush.bf16.xpose.msra.mxu0 0
        %484 = vmatpush.bf16.xpose.msra.mxu0 %v475
        %485 = vmatmul.bf16.gmra.mxu0 %v392
        %v486 = vpop.f32.mrf.mxu0
        %v487 = vadd.f32 0.0, %v486
        %v488 = vpop.f32.mrf.mxu0
        %489 = vdwg.mxu0
        %v491 = vsel %vm340, %v388, 0
        %493 = vmatpush.bf16.xpose.msra.mxu0 0
        %494 = vmatpush.bf16.xpose.msra.mxu0 0
        %495 = vmatpush.bf16.xpose.msra.mxu0 0
        %496 = vmatpush.bf16.xpose.msra.mxu0 0
        %497 = vmatpush.bf16.xpose.msra.mxu0 0
        %498 = vmatpush.bf16.xpose.msra.mxu0 0
        %499 = vmatpush.bf16.xpose.msra.mxu0 0
        %500 = vmatpush.bf16.xpose.msra.mxu0 %v491
        %501 = vmatmul.bf16.gmra.mxu0 %v392
        %v502 = vpop.f32.mrf.mxu0
        %v503 = vadd.f32 0.0, %v502
        %v504 = vpop.f32.mrf.mxu0
        %505 = vdwg.mxu0
        %v507 = vsel %vm340, %v389, 0
        %509 = vmatpush.bf16.xpose.msra.mxu0 0
        %510 = vmatpush.bf16.xpose.msra.mxu0 0
        %511 = vmatpush.bf16.xpose.msra.mxu0 0
        %512 = vmatpush.bf16.xpose.msra.mxu0 0
        %513 = vmatpush.bf16.xpose.msra.mxu0 0
        %514 = vmatpush.bf16.xpose.msra.mxu0 0
        %515 = vmatpush.bf16.xpose.msra.mxu0 0
        %516 = vmatpush.bf16.xpose.msra.mxu0 %v507
        %517 = vmatmul.bf16.gmra.mxu0 %v392
        %v518 = vpop.f32.mrf.mxu0
        %v519 = vadd.f32 0.0, %v518
        %v520 = vpop.f32.mrf.mxu0
        %521 = vdwg.mxu0
        %vm522 = vcmask 57344
        %v523 = vsel %vm522, %v407, -inf
        %524 = vmax.xlane.f32.xlu0 %v523
        %v525 = vpop.xlane.xlu0 %524
        %v526 = vsel %vm522, %v423, -inf
        %527 = vmax.xlane.f32.xlu0 %v526
        %v528 = vpop.xlane.xlu0 %527
        %v529 = vsel %vm522, %v439, -inf
        %530 = vmax.xlane.f32.xlu0 %v529
        %v531 = vpop.xlane.xlu0 %530
        %v532 = vsel %vm522, %v455, -inf
        %533 = vmax.xlane.f32.xlu0 %v532
        %v534 = vpop.xlane.xlu0 %533
        %v535 = vsel %vm522, %v471, -inf
        %536 = vmax.xlane.f32.xlu0 %v535
        %v537 = vpop.xlane.xlu0 %536
        %v538 = vsel %vm522, %v487, -inf
        %539 = vmax.xlane.f32.xlu0 %v538
        %v540 = vpop.xlane.xlu0 %539
        %v541 = vsel %vm522, %v503, -inf
        %542 = vmax.xlane.f32.xlu0 %v541
        %v543 = vpop.xlane.xlu0 %542
        %v544 = vsel %vm522, %v519, -inf
        %545 = vmax.xlane.f32.xlu0 %v544
        %v546 = vpop.xlane.xlu0 %545
        %v547 = vsub.f32 %v407, %v525
        %v548 = vsub.f32 %v423, %v528
        %v549 = vsub.f32 %v439, %v531
        %v550 = vsub.f32 %v455, %v534
        %v551 = vsub.f32 %v471, %v537
        %v552 = vsub.f32 %v487, %v540
        %v553 = vsub.f32 %v503, %v543
        %v554 = vsub.f32 %v519, %v546
        %v555 = vmul.f32 %v547, 1.442695
        %v556 = vpow.pop %v555
        %v557 = vmul.f32 %v548, 1.442695
        %v558 = vpow.pop %v557
        %v559 = vmul.f32 %v549, 1.442695
        %v560 = vpow.pop %v559
        %v561 = vmul.f32 %v550, 1.442695
        %v562 = vpow.pop %v561
        %v563 = vmul.f32 %v551, 1.442695
        %v564 = vpow.pop %v563
        %v565 = vmul.f32 %v552, 1.442695
        %v566 = vpow.pop %v565
        %v567 = vmul.f32 %v553, 1.442695
        %v568 = vpow.pop %v567
        %v569 = vmul.f32 %v554, 1.442695
        %v570 = vpow.pop %v569
        %v571 = vsel %vm522, %v556, 0.0
        %572 = vadd.xlane.f32.xlu0 %v571
        %v573 = vpop.xlane.xlu0 %572
        %v574 = vsel %vm522, %v558, 0.0
        %575 = vadd.xlane.f32.xlu0 %v574
        %v576 = vpop.xlane.xlu0 %575
        %v577 = vsel %vm522, %v560, 0.0
        %578 = vadd.xlane.f32.xlu0 %v577
        %v579 = vpop.xlane.xlu0 %578
        %v580 = vsel %vm522, %v562, 0.0
        %581 = vadd.xlane.f32.xlu0 %v580
        %v582 = vpop.xlane.xlu0 %581
        %v583 = vsel %vm522, %v564, 0.0
        %584 = vadd.xlane.f32.xlu0 %v583
        %v585 = vpop.xlane.xlu0 %584
        %v586 = vsel %vm522, %v566, 0.0
        %587 = vadd.xlane.f32.xlu0 %v586
        %v588 = vpop.xlane.xlu0 %587
        %v589 = vsel %vm522, %v568, 0.0
        %590 = vadd.xlane.f32.xlu0 %v589
        %v591 = vpop.xlane.xlu0 %590
        %v592 = vsel %vm522, %v570, 0.0
        %593 = vadd.xlane.f32.xlu0 %v592
        %v594 = vpop.xlane.xlu0 %593
        %v595 = vrcp.pop %v573
        %v596 = vmul.f32 %v573, %v595
        %v597 = vsub.f32 1.0, %v596
        %v598 = vmul.f32 %v595, %v597
        %v599 = vadd.f32 %v595, %v598
        %vm600 = vweird.f32 %v573
        %vm601 = vweird.f32 %v595
        %vm602 = vmor %vm600, %vm601
        %v603 = vsel %vm602, %v595, %v599
        %v604 = vand.u32 2147483647, %v573
        %vm605 = vcmp.eq.f32.partialorder %v604, 8.507059e+37
        %v606 = vand.u32 %v573, 2147483648
        %v607 = vor.u32 1.1754944e-38, %v606
        %v608 = vsel %vm605, %v607, %v603
        %v609 = vmul.f32 1.0, %v608
        %v610 = vrcp.pop %v576
        %v611 = vmul.f32 %v576, %v610
        %v612 = vsub.f32 1.0, %v611
        %v613 = vmul.f32 %v610, %v612
        %v614 = vadd.f32 %v610, %v613
        %vm615 = vweird.f32 %v576
        %vm616 = vweird.f32 %v610
        %vm617 = vmor %vm615, %vm616
        %v618 = vsel %vm617, %v610, %v614
        %v619 = vand.u32 2147483647, %v576
        %vm620 = vcmp.eq.f32.partialorder %v619, 8.507059e+37
        %v621 = vand.u32 %v576, 2147483648
        %v622 = vor.u32 1.1754944e-38, %v621
        %v623 = vsel %vm620, %v622, %v618
        %v624 = vmul.f32 1.0, %v623
        %v625 = vrcp.pop %v579
        %v626 = vmul.f32 %v579, %v625
        %v627 = vsub.f32 1.0, %v626
        %v628 = vmul.f32 %v625, %v627
        %v629 = vadd.f32 %v625, %v628
        %vm630 = vweird.f32 %v579
        %vm631 = vweird.f32 %v625
        %vm632 = vmor %vm630, %vm631
        %v633 = vsel %vm632, %v625, %v629
        %v634 = vand.u32 2147483647, %v579
        %vm635 = vcmp.eq.f32.partialorder %v634, 8.507059e+37
        %v636 = vand.u32 %v579, 2147483648
        %v637 = vor.u32 1.1754944e-38, %v636
        %v638 = vsel %vm635, %v637, %v633
        %v639 = vmul.f32 1.0, %v638
        %v640 = vrcp.pop %v582
        %v641 = vmul.f32 %v582, %v640
        %v642 = vsub.f32 1.0, %v641
        %v643 = vmul.f32 %v640, %v642
        %v644 = vadd.f32 %v640, %v643
        %vm645 = vweird.f32 %v582
        %vm646 = vweird.f32 %v640
        %vm647 = vmor %vm645, %vm646
        %v648 = vsel %vm647, %v640, %v644
        %v649 = vand.u32 2147483647, %v582
        %vm650 = vcmp.eq.f32.partialorder %v649, 8.507059e+37
        %v651 = vand.u32 %v582, 2147483648
        %v652 = vor.u32 1.1754944e-38, %v651
        %v653 = vsel %vm650, %v652, %v648
        %v654 = vmul.f32 1.0, %v653
        %v655 = vrcp.pop %v585
        %v656 = vmul.f32 %v585, %v655
        %v657 = vsub.f32 1.0, %v656
        %v658 = vmul.f32 %v655, %v657
        %v659 = vadd.f32 %v655, %v658
        %vm660 = vweird.f32 %v585
        %vm661 = vweird.f32 %v655
        %vm662 = vmor %vm660, %vm661
        %v663 = vsel %vm662, %v655, %v659
        %v664 = vand.u32 2147483647, %v585
        %vm665 = vcmp.eq.f32.partialorder %v664, 8.507059e+37
        %v666 = vand.u32 %v585, 2147483648
        %v667 = vor.u32 1.1754944e-38, %v666
        %v668 = vsel %vm665, %v667, %v663
        %v669 = vmul.f32 1.0, %v668
        %v670 = vrcp.pop %v588
        %v671 = vmul.f32 %v588, %v670
        %v672 = vsub.f32 1.0, %v671
        %v673 = vmul.f32 %v670, %v672
        %v674 = vadd.f32 %v670, %v673
        %vm675 = vweird.f32 %v588
        %vm676 = vweird.f32 %v670
        %vm677 = vmor %vm675, %vm676
        %v678 = vsel %vm677, %v670, %v674
        %v679 = vand.u32 2147483647, %v588
        %vm680 = vcmp.eq.f32.partialorder %v679, 8.507059e+37
        %v681 = vand.u32 %v588, 2147483648
        %v682 = vor.u32 1.1754944e-38, %v681
        %v683 = vsel %vm680, %v682, %v678
        %v684 = vmul.f32 1.0, %v683
        %v685 = vrcp.pop %v591
        %v686 = vmul.f32 %v591, %v685
        %v687 = vsub.f32 1.0, %v686
        %v688 = vmul.f32 %v685, %v687
        %v689 = vadd.f32 %v685, %v688
        %vm690 = vweird.f32 %v591
        %vm691 = vweird.f32 %v685
        %vm692 = vmor %vm690, %vm691
        %v693 = vsel %vm692, %v685, %v689
        %v694 = vand.u32 2147483647, %v591
        %vm695 = vcmp.eq.f32.partialorder %v694, 8.507059e+37
        %v696 = vand.u32 %v591, 2147483648
        %v697 = vor.u32 1.1754944e-38, %v696
        %v698 = vsel %vm695, %v697, %v693
        %v699 = vmul.f32 1.0, %v698
        %v700 = vrcp.pop %v594
        %v701 = vmul.f32 %v594, %v700
        %v702 = vsub.f32 1.0, %v701
        %v703 = vmul.f32 %v700, %v702
        %v704 = vadd.f32 %v700, %v703
        %vm705 = vweird.f32 %v594
        %vm706 = vweird.f32 %v700
        %vm707 = vmor %vm705, %vm706
        %v708 = vsel %vm707, %v700, %v704
        %v709 = vand.u32 2147483647, %v594
        %vm710 = vcmp.eq.f32.partialorder %v709, 8.507059e+37
        %v711 = vand.u32 %v594, 2147483648
        %v712 = vor.u32 1.1754944e-38, %v711
        %v713 = vsel %vm710, %v712, %v708
        %v714 = vmul.f32 1.0, %v713
        %v715 = vmul.f32 %v556, %v609
        %v716 = vmul.f32 %v558, %v624
        %v717 = vmul.f32 %v560, %v639
        %v718 = vmul.f32 %v562, %v654
        %v719 = vmul.f32 %v564, %v669
        %v720 = vmul.f32 %v566, %v684
        %v721 = vmul.f32 %v568, %v699
        %v722 = vmul.f32 %v570, %v714
        %723 = vst.msk [vmem:[%s289] sm:$0x1] %vm522, %v715
        %724 = vst.msk [vmem:[%s289 + $0x1] sm:$0x1] %vm522, %v716
        %725 = vst.msk [vmem:[%s289 + $0x2] sm:$0x1] %vm522, %v717
        %726 = vst.msk [vmem:[%s289 + $0x3] sm:$0x1] %vm522, %v718
        %727 = vst.msk [vmem:[%s289 + $0x4] sm:$0x1] %vm522, %v719
        %728 = vst.msk [vmem:[%s289 + $0x5] sm:$0x1] %vm522, %v720
        %729 = vst.msk [vmem:[%s289 + $0x6] sm:$0x1] %vm522, %v721
        %730 = vst.msk [vmem:[%s289 + $0x7] sm:$0x1] %vm522, %v722
        %v731 = vpack.c.bf16 %v715, %v715
        %v732 = vpack.c.bf16 %v716, %v716
        %v733 = vpack.c.bf16 %v717, %v717
        %v734 = vpack.c.bf16 %v718, %v718
        %v735 = vpack.c.bf16 %v719, %v719
        %v736 = vpack.c.bf16 %v720, %v720
        %v737 = vpack.c.bf16 %v721, %v721
        %v738 = vpack.c.bf16 %v722, %v722
        %vm739 = vcmask 64512
        %v741 = vsel %vm739, %v731, 0
        %vm743 = vcmask 1043456
        %v744 = vsel %vm743, %v382, 0
        %746 = vmatpush.bf16.msra.mxu0 0
        %747 = vmatpush.bf16.msra.mxu0 0
        %748 = vmatpush.bf16.msra.mxu0 0
        %749 = vmatpush.bf16.msra.mxu0 0
        %750 = vmatpush.bf16.msra.mxu0 0
        %751 = vmatpush.bf16.msra.mxu0 0
        %752 = vmatpush.bf16.msra.mxu0 0
        %753 = vmatpush.bf16.msra.mxu0 %v744
        %754 = vmatmul.bf16.gmra.mxu0 %v741
        %v755 = vpop.f32.mrf.mxu0
        %v756 = vadd.f32 0.0, %v755
        %v757 = vpop.f32.mrf.mxu0
        %758 = vdwg.mxu0
        %v760 = vsel %vm739, %v732, 0
        %v762 = vsel %vm743, %v383, 0
        %764 = vmatpush.bf16.msra.mxu0 0
        %765 = vmatpush.bf16.msra.mxu0 0
        %766 = vmatpush.bf16.msra.mxu0 0
        %767 = vmatpush.bf16.msra.mxu0 0
        %768 = vmatpush.bf16.msra.mxu0 0
        %769 = vmatpush.bf16.msra.mxu0 0
        %770 = vmatpush.bf16.msra.mxu0 0
        %771 = vmatpush.bf16.msra.mxu0 %v762
        %772 = vmatmul.bf16.gmra.mxu0 %v760
        %v773 = vpop.f32.mrf.mxu0
        %v774 = vadd.f32 0.0, %v773
        %v775 = vpop.f32.mrf.mxu0
        %776 = vdwg.mxu0
        %v778 = vsel %vm739, %v733, 0
        %v780 = vsel %vm743, %v384, 0
        %782 = vmatpush.bf16.msra.mxu0 0
        %783 = vmatpush.bf16.msra.mxu0 0
        %784 = vmatpush.bf16.msra.mxu0 0
        %785 = vmatpush.bf16.msra.mxu0 0
        %786 = vmatpush.bf16.msra.mxu0 0
        %787 = vmatpush.bf16.msra.mxu0 0
        %788 = vmatpush.bf16.msra.mxu0 0
        %789 = vmatpush.bf16.msra.mxu0 %v780
        %790 = vmatmul.bf16.gmra.mxu0 %v778
        %v791 = vpop.f32.mrf.mxu0
        %v792 = vadd.f32 0.0, %v791
        %v793 = vpop.f32.mrf.mxu0
        %794 = vdwg.mxu0
        %v796 = vsel %vm739, %v734, 0
        %v798 = vsel %vm743, %v385, 0
        %800 = vmatpush.bf16.msra.mxu0 0
        %801 = vmatpush.bf16.msra.mxu0 0
        %802 = vmatpush.bf16.msra.mxu0 0
        %803 = vmatpush.bf16.msra.mxu0 0
        %804 = vmatpush.bf16.msra.mxu0 0
        %805 = vmatpush.bf16.msra.mxu0 0
        %806 = vmatpush.bf16.msra.mxu0 0
        %807 = vmatpush.bf16.msra.mxu0 %v798
        %808 = vmatmul.bf16.gmra.mxu0 %v796
        %v809 = vpop.f32.mrf.mxu0
        %v810 = vadd.f32 0.0, %v809
        %v811 = vpop.f32.mrf.mxu0
        %812 = vdwg.mxu0
        %v814 = vsel %vm739, %v735, 0
        %v816 = vsel %vm743, %v386, 0
        %818 = vmatpush.bf16.msra.mxu0 0
        %819 = vmatpush.bf16.msra.mxu0 0
        %820 = vmatpush.bf16.msra.mxu0 0
        %821 = vmatpush.bf16.msra.mxu0 0
        %822 = vmatpush.bf16.msra.mxu0 0
        %823 = vmatpush.bf16.msra.mxu0 0
        %824 = vmatpush.bf16.msra.mxu0 0
        %825 = vmatpush.bf16.msra.mxu0 %v816
        %826 = vmatmul.bf16.gmra.mxu0 %v814
        %v827 = vpop.f32.mrf.mxu0
        %v828 = vadd.f32 0.0, %v827
        %v829 = vpop.f32.mrf.mxu0
        %830 = vdwg.mxu0
        %v832 = vsel %vm739, %v736, 0
        %v834 = vsel %vm743, %v387, 0
        %836 = vmatpush.bf16.msra.mxu0 0
        %837 = vmatpush.bf16.msra.mxu0 0
        %838 = vmatpush.bf16.msra.mxu0 0
        %839 = vmatpush.bf16.msra.mxu0 0
        %840 = vmatpush.bf16.msra.mxu0 0
        %841 = vmatpush.bf16.msra.mxu0 0
        %842 = vmatpush.bf16.msra.mxu0 0
        %843 = vmatpush.bf16.msra.mxu0 %v834
        %844 = vmatmul.bf16.gmra.mxu0 %v832
        %v845 = vpop.f32.mrf.mxu0
        %v846 = vadd.f32 0.0, %v845
        %v847 = vpop.f32.mrf.mxu0
        %848 = vdwg.mxu0
        %v850 = vsel %vm739, %v737, 0
        %v852 = vsel %vm743, %v388, 0
        %854 = vmatpush.bf16.msra.mxu0 0
        %855 = vmatpush.bf16.msra.mxu0 0
        %856 = vmatpush.bf16.msra.mxu0 0
        %857 = vmatpush.bf16.msra.mxu0 0
        %858 = vmatpush.bf16.msra.mxu0 0
        %859 = vmatpush.bf16.msra.mxu0 0
        %860 = vmatpush.bf16.msra.mxu0 0
        %861 = vmatpush.bf16.msra.mxu0 %v852
        %862 = vmatmul.bf16.gmra.mxu0 %v850
        %v863 = vpop.f32.mrf.mxu0
        %v864 = vadd.f32 0.0, %v863
        %v865 = vpop.f32.mrf.mxu0
        %866 = vdwg.mxu0
        %v868 = vsel %vm739, %v738, 0
        %v870 = vsel %vm743, %v389, 0
        %872 = vmatpush.bf16.msra.mxu0 0
        %873 = vmatpush.bf16.msra.mxu0 0
        %874 = vmatpush.bf16.msra.mxu0 0
        %875 = vmatpush.bf16.msra.mxu0 0
        %876 = vmatpush.bf16.msra.mxu0 0
        %877 = vmatpush.bf16.msra.mxu0 0
        %878 = vmatpush.bf16.msra.mxu0 0
        %879 = vmatpush.bf16.msra.mxu0 %v870
        %880 = vmatmul.bf16.gmra.mxu0 %v868
        %v881 = vpop.f32.mrf.mxu0
        %v882 = vadd.f32 0.0, %v881
        %v883 = vpop.f32.mrf.mxu0
        %884 = vdwg.mxu0
        %v885 = vadd.f32 %v756, 0.0
        %v886 = vadd.f32 %v774, 0.0
        %v887 = vadd.f32 %v792, 0.0
        %v888 = vadd.f32 %v810, 0.0
        %v889 = vadd.f32 %v828, 0.0
        %v890 = vadd.f32 %v846, 0.0
        %v891 = vadd.f32 %v864, 0.0
        %v892 = vadd.f32 %v882, 0.0
        %v893 = vpack.c.bf16 %v885, %v885
        %v894 = vpack.c.bf16 %v886, %v886
        %v895 = vpack.c.bf16 %v887, %v887
        %v896 = vpack.c.bf16 %v888, %v888
        %v897 = vpack.c.bf16 %v889, %v889
        %v898 = vpack.c.bf16 %v890, %v890
        %v899 = vpack.c.bf16 %v891, %v891
        %v900 = vpack.c.bf16 %v892, %v892
        %v901 = vld [vmem:[%s4] sm:$0xf]
        %v902 = vld [vmem:[%s4 + $0x4] sm:$0xf]
        %v903 = vld [vmem:[%s4 + $0x8] sm:$0xf]
        %v904 = vld [vmem:[%s4 + $0xc] sm:$0xf]
        %v905 = vld [vmem:[%s5] sm:$0x1]
        %v907 = vperm.slane %v905, 0
        %v917 = vunpack.c.l.b16 %v893
        %v918 = vunpack.c.l.b16 %v894
        %v919 = vunpack.c.l.b16 %v895
        %v920 = vunpack.c.l.b16 %v896
        %v921 = vunpack.c.l.b16 %v897
        %v922 = vunpack.c.l.b16 %v898
        %v923 = vunpack.c.l.b16 %v899
        %v924 = vunpack.c.l.b16 %v900
        %v925 = vrot.slane %v918, 7
        %vm926 = vcmask 1041409
        %v927 = vsel %vm926, %v925, %v917
        %v928 = vrot.slane %v919, 6
        %vm929 = vcmask 1042434
        %v930 = vsel %vm929, %v928, %v927
        %v931 = vrot.slane %v920, 5
        %vm932 = vcmask 1043459
        %v933 = vsel %vm932, %v931, %v930
        %v934 = vrot.slane %v921, 4
        %vm935 = vcmask 1044484
        %v936 = vsel %vm935, %v934, %v933
        %v937 = vrot.slane %v922, 3
        %vm938 = vcmask 1045509
        %v939 = vsel %vm938, %v937, %v936
        %v940 = vrot.slane %v923, 2
        %vm941 = vcmask 1046534
        %v942 = vsel %vm941, %v940, %v939
        %v943 = vrot.slane %v924, 1
        %vm944 = vcmask 1047559
        %v945 = vsel %vm944, %v943, %v942
        %v946 = vpack.c.b16 %v945, %v945
        %v951 = vunpack.c.l.b16 %v901
        %v952 = vunpack.c.l.b16 %v902
        %v953 = vunpack.c.l.b16 %v903
        %v954 = vunpack.c.l.b16 %v904
        %v955 = vpack.c.b16 %v952, %v951
        %v956 = vpack.c.b16 %v954, %v953
        %v960 = vsel %vm340, %v946, 0
        %962 = vmatpush.bf16.msra.mxu0 0
        %963 = vmatpush.bf16.msra.mxu0 0
        %964 = vmatpush.bf16.msra.mxu0 0
        %965 = vmatpush.bf16.msra.mxu0 0
        %966 = vmatpush.bf16.msra.mxu0 0
        %967 = vmatpush.bf16.msra.mxu0 0
        %968 = vmatpush.bf16.msra.mxu0 %v956
        %969 = vmatpush.bf16.msra.mxu0 %v955
        %970 = vmatmul.bf16.gmra.mxu0 %v960
        %v971 = vpop.f32.mrf.mxu0
        %v972 = vadd.f32 %v907, %v971
        %v973 = vpop.f32.mrf.mxu0
        %974 = vdwg.mxu0
        %975 = vst.msk [vmem:[%s273] sm:$0xff] %vm340, %v972
        %s976 = sand.u32 %s161, 1
        %s977 = scalar_lea.sflag [#allocation3], %s976
        %s978 = sand.u32 %s161, 1
        %s979 = smul.addr %s978, 8
        %s980 = scalar_lea.vmem [#allocation2], %s979
        %s981 = smul.u32 8, %s22
        %p982 = scmp.lt.s32.totalorder %s981, 15
        %s983 = scalar_select %p982, %s981, 15
        %s984 = scalar_lea.vmem %s7, %s983
        // Predicated region
        $region45: #{tpu_custom_call.1} parent=43 // pred_check
          %p985 = pneg %p171
        $region46: #{tpu_custom_call.1} parent=43 // pred_check_branch
          %987 = sbr.rel (%p985) target = $region48
        $region47: #{tpu_custom_call.1} parent=43 // pred_region
          %989 = vsyncadd %s977, 0
          %s990 = smul.addr %s22, 8
          %s991 = scalar_lea.hbm %s6, %s990
          %s993 = sshll.u32 %s980, 4
          %s994 = int_to_ptr.vmem [resolvable:$true] %s993
          %s995 = sshll.u32 %s991, 4
          %s996 = int_to_ptr.hbm [resolvable:$true] %s995
          %998 = dma.vmem_to_hbm [thread:$0]  %s994, 128, %s996, %s977
        $region48: #{tpu_custom_call.1} parent=43 // pred_fallthru
          _
        // Predicated region
        $region49: #{tpu_custom_call.1} parent=43 // pred_check
          %p999 = pneg %p197
        $region50: #{tpu_custom_call.1} parent=43 // pred_check_branch
          %1001 = sbr.rel (%p999) target = $region52
        $region51: #{tpu_custom_call.1} parent=43 // pred_region
          %s1002 = smul.u32 8, %s22
        $region52: #{tpu_custom_call.1} parent=43 // pred_fallthru
          _
      $region44: #{tpu_custom_call.1} parent=5 // pred_fallthru
        _
      %p1003 = scmp.le.s32.totalorder 2, %s17
      // Predicated region
      $region53: #{tpu_custom_call.1} parent=5 // pred_check
        %p1004 = pneg %p1003
      $region54: #{tpu_custom_call.1} parent=5 // pred_check_branch
        %1006 = sbr.rel (%p1004) target = $region56
      $region55: #{tpu_custom_call.1} parent=5 // pred_region
        %s1007 = ssub.s32 %s17, 2
        // Predicated region
        $region57: #{tpu_custom_call.1} parent=55 // pred_check
          %p1008 = pneg %p177
        $region58: #{tpu_custom_call.1} parent=55 // pred_check_branch
          %1010 = sbr.rel (%p1008) target = $region60
        $region59: #{tpu_custom_call.1} parent=55 // pred_region
          %s1011 = sand.u32 %s162, 1
          %s1012 = scalar_lea.sflag [#allocation3], %s1011
          %s1013 = sand.u32 %s162, 1
          %s1014 = smul.addr %s1013, 8
          %s1015 = scalar_lea.vmem [#allocation2], %s1014
          %1017 = dma.done %s1012, 128
        $region60: #{tpu_custom_call.1} parent=55 // pred_fallthru
          _
        // Predicated region
        $region61: #{tpu_custom_call.1} parent=55 // pred_check
          %p1018 = pneg %p203
        $region62: #{tpu_custom_call.1} parent=55 // pred_check_branch
          %1020 = sbr.rel (%p1018) target = $region64
        $region63: #{tpu_custom_call.1} parent=55 // pred_region
          %s1021 = smul.u32 8, %s23
          %p1022 = scmp.lt.s32.totalorder %s1021, 15
          %s1023 = scalar_select %p1022, %s1021, 15
          %s1024 = scalar_lea.vmem %s7, %s1023
        $region64: #{tpu_custom_call.1} parent=55 // pred_fallthru
          _
      $region56: #{tpu_custom_call.1} parent=5 // pred_fallthru
        _
    $region6: #{tpu_custom_call.1} parent=1 // loop_footer
      %s21 = sadd.s32 1, %s17
    $region7: #{tpu_custom_call.1} parent=1 // loop_footer_branch
      %16 = sbr.rel target = $region3
    $region8: #{tpu_custom_call.1} parent=1 // loop_exit
      _
    %1025 = vsyncpa [#allocation3], 1
    %s1026 = scalar_lea.sflag [#allocation3], 1
    %1027 = vsyncpa %s1026, 1

</llo_original>
